<compile_context>
chip_gen: v7x
topology: tpu7x:2x2x1
jax: 0.10.0
libtpu: 0.0.40
codegen_flags: <defaults>
</compile_context>

<pallas_src>
import math

import jax
import jax.numpy as jnp
from jax.experimental import pallas as pl
from jax.experimental.pallas import tpu as pltpu


def _round_up(x: int, m: int) -> int:
    return ((x + m - 1) // m) * m


def _query_vmem_capacity_bytes() -> int:
    """Physical VMEM per core; conservative (v7x-sized) fallback if unknown."""
    try:
        info = pltpu.get_tpu_info()
        cap = int(getattr(info, "vmem_capacity_bytes", 0))
        if cap > 0:
            return cap
    except Exception:
        pass
    return 64 << 20


# --------------------------------------------------------------------------- #
# Kernels
# --------------------------------------------------------------------------- #
def _lm_head_kernel(x_ref, w_ref, o_ref):
    """Full-K single-pass tile: o = x @ w with f32 accumulation on the MXU."""
    o_ref[...] = jnp.dot(
        x_ref[...], w_ref[...], preferred_element_type=jnp.float32
    ).astype(o_ref.dtype)


def _lm_head_kernel_kacc(x_ref, w_ref, o_ref, acc_ref):
    """K-split fallback (only used when embed_dim is extremely large)."""
    @pl.when(pl.program_id(2) == 0)
    def _():
        acc_ref[...] = jnp.zeros_like(acc_ref)

    acc_ref[...] += jnp.dot(
        x_ref[...], w_ref[...], preferred_element_type=jnp.float32
    )

    @pl.when(pl.program_id(2) == pl.num_programs(2) - 1)
    def _():
        o_ref[...] = acc_ref[...].astype(o_ref.dtype)


# --------------------------------------------------------------------------- #
# pallas_call wrapper
# --------------------------------------------------------------------------- #
def lm_head_matmul(x2d, w_ev, *, tm: int, tn: int, tk: int,
                   out_dtype, vmem_limit_bytes: int):
    """x2d: (M, E), w_ev: (E, V) -> (M, V) in out_dtype.

    M must be a multiple of tm, V a multiple of tn, and (K-split path only)
    E a multiple of tk.  Callers pad accordingly.
    """
    M, E = x2d.shape
    E2, V = w_ev.shape
    assert E == E2
    assert M % tm == 0 and V % tn == 0

    grid_m, grid_n = M // tm, V // tn
    x_b = jnp.dtype(x2d.dtype).itemsize
    w_b = jnp.dtype(w_ev.dtype).itemsize
    o_b = jnp.dtype(out_dtype).itemsize
    cost = pl.CostEstimate(
        flops=2 * M * E * V,
        transcendentals=0,
        bytes_accessed=M * E * x_b + E * V * w_b + M * V * o_b,
    )

    if tk >= E:
        # ---- single-pass path: whole reduction in one MXU call per tile.
        # Vocab axis OUTER (weight-stationary; v7x megacore splits on it),
        # row axis INNER (only the small (tm, E) x tile is re-fetched).
        return pl.pallas_call(
            _lm_head_kernel,
            out_shape=jax.ShapeDtypeStruct((M, V), out_dtype),
            grid_spec=pltpu.PrefetchScalarGridSpec(
                num_scalar_prefetch=0,
                grid=(grid_n, grid_m),
                in_specs=[
                    pl.BlockSpec((tm, E), lambda j, i: (i, 0)),
                    pl.BlockSpec((E, tn), lambda j, i: (0, j)),
                ],
                out_specs=pl.BlockSpec((tm, tn), lambda j, i: (i, j)),
            ),
            compiler_params=pltpu.CompilerParams(
                dimension_semantics=("parallel", "parallel"),
                vmem_limit_bytes=vmem_limit_bytes,
            ),
            cost_estimate=cost,
        )(x2d, w_ev)

    # ---- K-split fallback (very large embed_dim) ---- #
    assert E % tk == 0
    grid_k = E // tk
    return pl.pallas_call(
        _lm_head_kernel_kacc,
        out_shape=jax.ShapeDtypeStruct((M, V), out_dtype),
        grid_spec=pltpu.PrefetchScalarGridSpec(
            num_scalar_prefetch=0,
            grid=(grid_n, grid_m, grid_k),
            in_specs=[
                pl.BlockSpec((tm, tk), lambda j, i, k: (i, k)),
                pl.BlockSpec((tk, tn), lambda j, i, k: (k, j)),
            ],
            out_specs=pl.BlockSpec((tm, tn), lambda j, i, k: (i, j)),
            scratch_shapes=[pltpu.VMEM((tm, tn), jnp.float32)],
        ),
        compiler_params=pltpu.CompilerParams(
            dimension_semantics=("parallel", "parallel", "arbitrary"),
            vmem_limit_bytes=vmem_limit_bytes,
        ),
        cost_estimate=cost,
    )(x2d, w_ev)


# --------------------------------------------------------------------------- #
# Module wrapper (PyTorch LMHead equivalent)
# --------------------------------------------------------------------------- #
class LMHeadPallas:
    """Pallas equivalent of `nn.Linear(embed_dim, vocab_size, bias=False)`."""

    _TN_HARD_MAX = 2048
    _TK_SPLIT = 2048

    def __init__(self, vocab_size: int, embed_dim: int, weight=None, *,
                 key=None, compute_dtype=jnp.bfloat16,
                 out_dtype=jnp.float32) -> None:
        self.vocab_size = vocab_size
        self.embed_dim = embed_dim
        self.compute_dtype = compute_dtype
        self.out_dtype = out_dtype

        if weight is None:
            assert key is not None, "pass either `weight` or `key`"
            # PyTorch nn.Linear default init: U(-1/sqrt(in), 1/sqrt(in)),
            # weight shape (vocab_size, embed_dim).
            bound = 1.0 / math.sqrt(embed_dim)
            weight = jax.random.uniform(
                key, (vocab_size, embed_dim), jnp.float32, -bound, bound
            )
        assert weight.shape == (vocab_size, embed_dim)

        # ---- generation-aware VMEM budget & tile caps ---- #
        vmem_cap = _query_vmem_capacity_bytes()
        budget = int(vmem_cap * 0.80)                       # double-buffered tile budget
        self._vmem_ceiling = max(int(vmem_cap * 0.85), 32 << 20)
        self._tm_max = 512 if vmem_cap >= (100 << 20) else 256   # 128 MiB vs 64 MiB parts

        x_b = w_b = jnp.dtype(compute_dtype).itemsize
        o_b = max(jnp.dtype(out_dtype).itemsize, 4)          # f32 acc in K-split path

        def max_tn(k_dim: int) -> int:
            # 2 * (tm*K*x_b + K*tn*w_b + tm*tn*o_b) <= budget, solved for tn.
            avail = budget - 2 * self._tm_max * k_dim * x_b
            denom = 2 * (k_dim * w_b + self._tm_max * o_b)
            if avail <= 0:
                return 0
            return min(self._TN_HARD_MAX, (avail // denom) // 128 * 128)

        # Prefer a single MXU pass over the whole reduction (no accumulator
        # scratch, no init/finalize branches, fewer grid steps).
        tn_full = max_tn(embed_dim)
        if tn_full >= 128:
            self.tk = embed_dim
            tn_cap = tn_full
            self._e_pad = embed_dim                # no E padding needed
        else:
            self.tk = self._TK_SPLIT               # K-accumulate fallback
            tn_cap = max(128, max_tn(self.tk))
            self._e_pad = _round_up(embed_dim, self.tk)

        self.tn = min(tn_cap, _round_up(vocab_size, 128))
        self._v_pad = _round_up(vocab_size, self.tn)

        # Pre-transpose + cast + pad the weight ONCE; the f32 (V, E) copy is
        # NOT retained (caller keeps it if needed, e.g. for tying/training).
        w_ev = jnp.swapaxes(weight, 0, 1).astype(compute_dtype)   # (E, V)
        pad_e = self._e_pad - embed_dim
        pad_v = self._v_pad - vocab_size
        if pad_e or pad_v:
            w_ev = jnp.pad(w_ev, ((0, pad_e), (0, pad_v)))
        self.w_ev = w_ev
        # TODO(synk): optional int8 (v5e/v6e) / fp8 (v7x) weight streaming with
        # per-column scales folded into the f32 accumulator.

    # Row-tile selection: multiple of 16 (bf16 sublane packing); exact fit for
    # small M, minimal padded rows (tie-break: larger tile) for large M.
    def _pick_tm(self, M: int) -> int:
        if M <= self._tm_max:
            return _round_up(max(M, 1), 16)
        best_t, best_pad = None, None
        for t in (128, 256, 512):
            if t > self._tm_max:
                continue
            p = _round_up(M, t)
            if best_pad is None or p < best_pad or (p == best_pad and t > best_t):
                best_t, best_pad = t, p
        return best_t

    def __call__(self, hidden_states: jnp.ndarray) -> jnp.ndarray:
        assert hidden_states.shape[-1] == self.embed_dim
        lead = hidden_states.shape[:-1]
        M = int(math.prod(lead)) if lead else 1

        x2d = hidden_states.reshape(M, self.embed_dim)
        if x2d.dtype != self.compute_dtype:
            x2d = x2d.astype(self.compute_dtype)

        tm = self._pick_tm(M)
        m_pad = _round_up(M, tm)
        pad_m = m_pad - M
        pad_e = self._e_pad - self.embed_dim   # 0 on the single-pass path
        if pad_m or pad_e:
            x2d = jnp.pad(x2d, ((0, pad_m), (0, pad_e)))

        # Per-call VMEM limit: double-buffered footprint + headroom, clamped to
        # the generation-aware ceiling.
        x_b = jnp.dtype(self.compute_dtype).itemsize
        o_b = jnp.dtype(self.out_dtype).itemsize
        tile_k = min(self.tk, self._e_pad)
        tile_bytes = 2 * (tm * tile_k * x_b + tile_k * self.tn * x_b
                          + tm * self.tn * o_b)
        if self.tk < self._e_pad:
            tile_bytes += tm * self.tn * 4     # accumulator scratch
        vmem_limit = int(min(max(tile_bytes + (8 << 20), 32 << 20),
                             self._vmem_ceiling))

        out2d = lm_head_matmul(
            x2d, self.w_ev, tm=tm, tn=self.tn, tk=self.tk,
            out_dtype=self.out_dtype, vmem_limit_bytes=vmem_limit,
        )
        out2d = out2d[:M, : self.vocab_size]
        return out2d.reshape(*lead, self.vocab_size)


# --------------------------------------------------------------------------- #
# Self-test
# --------------------------------------------------------------------------- #
if __name__ == "__main__":
    key = jax.random.PRNGKey(0)
    k_w, k_x = jax.random.split(key)

    batch, seq, embed_dim, vocab_size = 2, 8, 128, 256
    bound = 1.0 / math.sqrt(embed_dim)
    weight = jax.random.uniform(
        k_w, (vocab_size, embed_dim), jnp.float32, -bound, bound
    )
    module = LMHeadPallas(vocab_size, embed_dim, weight=weight)
    hidden_states = jax.random.normal(k_x, (batch, seq, embed_dim), jnp.float32)

    logits = jax.block_until_ready(module(hidden_states))
    assert logits.shape == (batch, seq, vocab_size)
    assert logits.dtype == jnp.float32

    # Exact-math reference with the same bf16-input / f32-accumulate semantics
    # as the kernel.
    ref_bf16 = jnp.dot(
        hidden_states.reshape(batch * seq, embed_dim).astype(jnp.bfloat16),
        weight.T.astype(jnp.bfloat16),
        preferred_element_type=jnp.float32,
    ).reshape(batch, seq, vocab_size)
    assert jnp.allclose(logits, ref_bf16, atol=1e-4, rtol=1e-4)

    # Loose check against the full-f32 torch-style linear (bf16 weight
    # streaming introduces ~0.4% rounding).
    ref_f32 = hidden_states @ weight.T
    assert jnp.allclose(logits, ref_f32, atol=1e-1, rtol=1e-1)

    print("KERNEL_OK")
</pallas_src>

<mosaic_0001>
module attributes {stable_mosaic.version = 11 : i64} {
  func.func @_lm_head_kernel(%arg0: i32, %arg1: i32, %arg2: memref<16x128xbf16, #tpu.memory_space<vmem>>, %arg3: memref<128x256xbf16, #tpu.memory_space<vmem>>, %arg4: memref<16x256xf32, #tpu.memory_space<vmem>>) attributes {dimension_semantics = [#tpu.dimension_semantics<parallel>, #tpu.dimension_semantics<parallel>], iteration_bounds = array<i64: 1, 1>, scalar_prefetch = 0 : i64, scratch_operands = 0 : i64, tpu.core_type = #tpu.core_type<tc>, window_params = [{transform_indices = @transform_0, window_bounds = array<i64: 16, 128>}, {transform_indices = @transform_1, window_bounds = array<i64: 128, 256>}, {transform_indices = @transform_2, window_bounds = array<i64: 16, 256>}]} {
    %c0 = arith.constant 0 : index
    %c0_0 = arith.constant 0 : index
    %0 = vector.load %arg2[%c0, %c0_0] : memref<16x128xbf16, #tpu.memory_space<vmem>>, vector<16x128xbf16>
    %c0_1 = arith.constant 0 : index
    %c0_2 = arith.constant 0 : index
    %1 = vector.load %arg3[%c0_1, %c0_2] : memref<128x256xbf16, #tpu.memory_space<vmem>>, vector<128x256xbf16>
    %cst = arith.constant dense<0.000000e+00> : vector<16x256xf32>
    %2 = tpu.matmul %0, %1, %cst {dimension_numbers = #tpu.dot_dimension_numbers<[1], [0], [0], [1], [0, 0, 1, 1], [], []>} : vector<16x128xbf16>, vector<128x256xbf16>, vector<16x256xf32> -> vector<16x256xf32>
    %c0_3 = arith.constant 0 : index
    %c0_4 = arith.constant 0 : index
    %3 = vector.load %arg4[%c0_3, %c0_4] : memref<16x256xf32, #tpu.memory_space<vmem>>, vector<16x256xf32>
    tpu.vector_store %arg4[%c0_3, %c0_4], %2 {strides = array<i32>} : memref<16x256xf32, #tpu.memory_space<vmem>>, vector<16x256xf32>,
    return
  }
  func.func @transform_0(%arg0: i32, %arg1: i32) -> (i32, i32) {
    %c0_i32 = arith.constant 0 : i32
    %c0_i32_0 = arith.constant 0 : i32
    return %arg1, %c0_i32 : i32, i32
  }
  func.func @transform_1(%arg0: i32, %arg1: i32) -> (i32, i32) {
    %c0_i32 = arith.constant 0 : i32
    %c0_i32_0 = arith.constant 0 : i32
    return %c0_i32, %arg0 : i32, i32
  }
  func.func @transform_2(%arg0: i32, %arg1: i32) -> (i32, i32) {
    %c0_i32 = arith.constant 0 : i32
    return %arg1, %arg0 : i32, i32
  }
}

</mosaic_0001>

<llo_original>
// kernel: tpu_custom_call.1
$region0: #{tpu_custom_call.1}
  #allocation0 [shape = 'u32[]', space=smem, size = 0x4, offset = 0x4, fixed_abs, tag = 'smem constant byte address 0x4 - core index']
  #allocation1 [shape = 'u32[144,128]{1,0:T(1,128)}', space=vmem, size = 0x12000, scoped, tag = 'internal scratch']
  %s0 = inlined_call_operand.hbm [shape: bf16[16,128], index: 0, kind: input, shape index: {}]
  %s1 = inlined_call_operand.hbm [shape: bf16[128,256], index: 1, kind: input, shape index: {}]
  %s2 = inlined_call_operand.hbm [shape: f32[16,256], index: 2, kind: output, shape index: {}]
  %s3 = sld [smem:[#allocation0]]
  $region26: #{tpu_custom_call.1} parent=0
    _
  %s5 = ssub.s32 1, %s3
  %s6 = scalar_select 0, %s5, %s3
  $region1: #{tpu_custom_call.1} parent=0
    #allocation2 [shape = 'u8[4096]{0}', space=vmem, size = 0x1000, scoped, tag = 'input window, operand 0, single buffered']
    #allocation3 [shape = 's32[1]{0}', space=sflag, size = 0x4, scoped, tag = 'scoped memory for tpu_custom_call.1']
    #allocation4 [shape = 's32[1]{0}', space=sflag, size = 0x4, scoped, tag = 'scoped memory for tpu_custom_call.1']
    #allocation5 [shape = 'u8[65536]{0}', space=vmem, size = 0x10000, scoped, tag = 'input window, operand 1, single buffered']
    #allocation6 [shape = 's32[1]{0}', space=sflag, size = 0x4, scoped, tag = 'scoped memory for tpu_custom_call.1']
    #allocation7 [shape = 'u8[16384]{0}', space=vmem, size = 0x4000, scoped, tag = 'output window, operand 0, single buffered']
    %7 = vsyncpa [#allocation3], 0
    %8 = vsyncpa [#allocation6], 0
    %9 = vsyncpa [#allocation4], 0
    // Predicated region
    $region2: #{tpu_custom_call.1} parent=1 // pred_check
      _
    $region3: #{tpu_custom_call.1} parent=1 // pred_check_branch
      %11 = sbr.rel (0) target = $region5
    $region4: #{tpu_custom_call.1} parent=1 // pred_region
      %s13 = ssub.s32 128, 128
      %14 = vsyncadd [#allocation3], %s13
      %s15 = sshll.u32 [#allocation2], 4
      %s16 = int_to_ptr.vmem [resolvable:$true] %s15
      %21 = dma.hbm_to_vmem [thread:$0]  %s0, 128, %s16, [#allocation3], 64, 64, 4
    $region5: #{tpu_custom_call.1} parent=1 // pred_fallthru
      _
    // Predicated region
    $region6: #{tpu_custom_call.1} parent=1 // pred_check
      _
    $region7: #{tpu_custom_call.1} parent=1 // pred_check_branch
      %23 = sbr.rel (0) target = $region9
    $region8: #{tpu_custom_call.1} parent=1 // pred_region
      %s25 = ssub.s32 2048, 2048
      %26 = vsyncadd [#allocation6], %s25
      %s27 = sshll.u32 [#allocation5], 4
      %s28 = int_to_ptr.vmem [resolvable:$true] %s27
      %33 = dma.hbm_to_vmem [thread:$0]  %s1, 2048, %s28, [#allocation6], 128, 128, 8
    $region9: #{tpu_custom_call.1} parent=1 // pred_fallthru
      _
    // Predicated region
    $region10: #{tpu_custom_call.1} parent=1 // pred_check
      _
    $region11: #{tpu_custom_call.1} parent=1 // pred_check_branch
      %35 = sbr.rel (0) target = $region13
    $region12: #{tpu_custom_call.1} parent=1 // pred_region
      %36 = dma.done [#allocation3], 128
    $region13: #{tpu_custom_call.1} parent=1 // pred_fallthru
      _
    // Predicated region
    $region14: #{tpu_custom_call.1} parent=1 // pred_check
      _
    $region15: #{tpu_custom_call.1} parent=1 // pred_check_branch
      %38 = sbr.rel (0) target = $region17
    $region16: #{tpu_custom_call.1} parent=1 // pred_region
      %39 = dma.done [#allocation6], 2048
    $region17: #{tpu_custom_call.1} parent=1 // pred_fallthru
      _
    %v41 = vld [vmem:[#allocation2] sm:$0xf]
    %v42 = vld [vmem:[#allocation2 + $0x4] sm:$0xf]
    %v43 = vld [vmem:[#allocation5] sm:$0xff]
    %v44 = vld [vmem:[#allocation5 + $0x8] sm:$0xff]
    %v45 = vld [vmem:[#allocation5 + $0x10] sm:$0xff]
    %v46 = vld [vmem:[#allocation5 + $0x18] sm:$0xff]
    %v47 = vld [vmem:[#allocation5 + $0x20] sm:$0xff]
    %v48 = vld [vmem:[#allocation5 + $0x28] sm:$0xff]
    %v49 = vld [vmem:[#allocation5 + $0x30] sm:$0xff]
    %v50 = vld [vmem:[#allocation5 + $0x38] sm:$0xff]
    %v51 = vld [vmem:[#allocation5 + $0x40] sm:$0xff]
    %v52 = vld [vmem:[#allocation5 + $0x48] sm:$0xff]
    %v53 = vld [vmem:[#allocation5 + $0x50] sm:$0xff]
    %v54 = vld [vmem:[#allocation5 + $0x58] sm:$0xff]
    %v55 = vld [vmem:[#allocation5 + $0x60] sm:$0xff]
    %v56 = vld [vmem:[#allocation5 + $0x68] sm:$0xff]
    %v57 = vld [vmem:[#allocation5 + $0x70] sm:$0xff]
    %v58 = vld [vmem:[#allocation5 + $0x78] sm:$0xff]
    %v61 = vunpack.c.l.b16 %v41
    %v62 = vunpack.c.l.b16 %v42
    %v63 = vpack.c.b16 %v62, %v61
    %v81 = vunpack.c.l.b16 %v43
    %v82 = vunpack.c.h.b16 %v43
    %v83 = vunpack.c.l.b16 %v44
    %v84 = vunpack.c.h.b16 %v44
    %v85 = vunpack.c.l.b16 %v45
    %v86 = vunpack.c.h.b16 %v45
    %v87 = vunpack.c.l.b16 %v46
    %v88 = vunpack.c.h.b16 %v46
    %v89 = vunpack.c.l.b16 %v47
    %v90 = vunpack.c.h.b16 %v47
    %v91 = vunpack.c.l.b16 %v48
    %v92 = vunpack.c.h.b16 %v48
    %v93 = vunpack.c.l.b16 %v49
    %v94 = vunpack.c.h.b16 %v49
    %v95 = vunpack.c.l.b16 %v50
    %v96 = vunpack.c.h.b16 %v50
    %v97 = vunpack.c.l.b16 %v51
    %v98 = vunpack.c.h.b16 %v51
    %v99 = vunpack.c.l.b16 %v52
    %v100 = vunpack.c.h.b16 %v52
    %v101 = vunpack.c.l.b16 %v53
    %v102 = vunpack.c.h.b16 %v53
    %v103 = vunpack.c.l.b16 %v54
    %v104 = vunpack.c.h.b16 %v54
    %v105 = vunpack.c.l.b16 %v55
    %v106 = vunpack.c.h.b16 %v55
    %v107 = vunpack.c.l.b16 %v56
    %v108 = vunpack.c.h.b16 %v56
    %v109 = vunpack.c.l.b16 %v57
    %v110 = vunpack.c.h.b16 %v57
    %v111 = vunpack.c.l.b16 %v58
    %v112 = vunpack.c.h.b16 %v58
    %v113 = vpack.c.b16 %v83, %v81
    %v114 = vpack.c.b16 %v84, %v82
    %v115 = vpack.c.b16 %v87, %v85
    %v116 = vpack.c.b16 %v88, %v86
    %v117 = vpack.c.b16 %v91, %v89
    %v118 = vpack.c.b16 %v92, %v90
    %v119 = vpack.c.b16 %v95, %v93
    %v120 = vpack.c.b16 %v96, %v94
    %v121 = vpack.c.b16 %v99, %v97
    %v122 = vpack.c.b16 %v100, %v98
    %v123 = vpack.c.b16 %v103, %v101
    %v124 = vpack.c.b16 %v104, %v102
    %v125 = vpack.c.b16 %v107, %v105
    %v126 = vpack.c.b16 %v108, %v106
    %v127 = vpack.c.b16 %v111, %v109
    %v128 = vpack.c.b16 %v112, %v110
    %145 = vmatprep.subr.bf16.mxu0 %v114
    %146 = vmatpush1.bf16.msra.mxu0 %v113
    %147 = vmatprep.subr.bf16.mxu0 %v116
    %148 = vmatpush1.bf16.msra.mxu0 %v115
    %149 = vmatprep.subr.bf16.mxu0 %v118
    %150 = vmatpush1.bf16.msra.mxu0 %v117
    %151 = vmatprep.subr.bf16.mxu0 %v120
    %152 = vmatpush1.bf16.msra.mxu0 %v119
    %153 = vmatprep.subr.bf16.mxu0 %v122
    %154 = vmatpush1.bf16.msra.mxu0 %v121
    %155 = vmatprep.subr.bf16.mxu0 %v124
    %156 = vmatpush1.bf16.msra.mxu0 %v123
    %157 = vmatprep.subr.bf16.mxu0 %v126
    %158 = vmatpush1.bf16.msra.mxu0 %v125
    %159 = vmatprep.subr.bf16.mxu0 %v128
    %160 = vmatpush1.bf16.msra.mxu0 %v127
    %161 = vmatprep.subr.bf16.mxu0 0
    %162 = vmatpush1.bf16.msra.mxu0 0
    %163 = vmatprep.subr.bf16.mxu0 0
    %164 = vmatpush1.bf16.msra.mxu0 0
    %165 = vmatprep.subr.bf16.mxu0 0
    %166 = vmatpush1.bf16.msra.mxu0 0
    %167 = vmatprep.subr.bf16.mxu0 0
    %168 = vmatpush1.bf16.msra.mxu0 0
    %169 = vmatprep.subr.bf16.mxu0 0
    %170 = vmatpush1.bf16.msra.mxu0 0
    %171 = vmatprep.subr.bf16.mxu0 0
    %172 = vmatpush1.bf16.msra.mxu0 0
    %173 = vmatprep.subr.bf16.mxu0 0
    %174 = vmatpush1.bf16.msra.mxu0 0
    %175 = vmatprep.subr.bf16.mxu0 0
    %176 = vmatpush1.bf16.msra.mxu0 0
    %177 = vmatprep.mubr.bf16.mxu0 0
    %178 = vmatmul.mubr.bf16.gmra.mrb[0].mxu0 %v63
    %v179 = vpop.f32.mrb[0].mxu0
    %v180 = vadd.f32 0.0, %v179
    %v181 = vpop.f32.mrb[0].mxu0
    %v182 = vadd.f32 0.0, %v181
    %v183 = vpop.f32.mrb[0].mxu0
    %v184 = vadd.f32 0.0, %v183
    %v185 = vpop.f32.mrb[0].mxu0
    %v186 = vadd.f32 0.0, %v185
    %187 = vdwg.mxu0
    %188 = vst [vmem:[#allocation7] sm:$0xff] %v180
    %189 = vst [vmem:[#allocation7 + $0x8] sm:$0xff] %v182
    %190 = vst [vmem:[#allocation7 + $0x10] sm:$0xff] %v184
    %191 = vst [vmem:[#allocation7 + $0x18] sm:$0xff] %v186
    // Predicated region
    $region18: #{tpu_custom_call.1} parent=1 // pred_check
      _
    $region19: #{tpu_custom_call.1} parent=1 // pred_check_branch
      %193 = sbr.rel (0) target = $region21
    $region20: #{tpu_custom_call.1} parent=1 // pred_region
      %s195 = ssub.s32 512, 512
      %196 = vsyncadd [#allocation4], %s195
      %s197 = sshll.u32 [#allocation7], 4
      %s198 = int_to_ptr.vmem [resolvable:$true] %s197
      %203 = dma.vmem_to_hbm [thread:$0]  %s198, 512, %s2, [#allocation4], 256, 256, 16
    $region21: #{tpu_custom_call.1} parent=1 // pred_fallthru
      _
    // Predicated region
    $region22: #{tpu_custom_call.1} parent=1 // pred_check
      _
    $region23: #{tpu_custom_call.1} parent=1 // pred_check_branch
      %205 = sbr.rel (0) target = $region25
    $region24: #{tpu_custom_call.1} parent=1 // pred_region
      %206 = dma.done [#allocation4], 512
    $region25: #{tpu_custom_call.1} parent=1 // pred_fallthru
      _
    %207 = vsyncpa [#allocation3], 1
    %208 = vsyncpa [#allocation6], 1
    %209 = vsyncpa [#allocation4], 1

</llo_original>
